<compile_context>
chip_gen: v7x
topology: tpu7x:2x2x1
jax: 0.10.0
libtpu: 0.0.40
codegen_flags: <defaults>
</compile_context>

<pallas_src>
from functools import partial

import numpy as np
import jax
import jax.numpy as jnp
from jax.experimental import pallas as pl
from jax.experimental.pallas import tpu as pltpu


def _local_exposure_kernel(factor_ref, img_ref, alpha_ref, out_ref):
    """Grid is (num_col_tiles, num_row_tiles); row axis innermost so alpha's
    block index (0, t) is constant across consecutive steps (no re-DMA).
    factor_ref: (1,) f32 in SMEM.
    img_ref/out_ref block: (R, T) rows of the flattened (N*C, H*W) image.
    alpha_ref block:       (1, T) bf16, sublane-broadcast in the blend."""
    factor = factor_ref[0]
    orig = img_ref[...].astype(jnp.float32)              # (R, T)
    # Lower clamp of ImageEnhance.Brightness is dead: orig >= 0, factor > 0.
    bright = jnp.minimum(orig * factor, 255.0)
    a = alpha_ref[...].astype(jnp.float32)                # (1, T) -> f32
    out_ref[...] = (orig + (bright - orig) * a).astype(out_ref.dtype)


def _gauss_matrix(n, sigma):
    # Edge-truncated, row-normalized Gaussian, band-limited to ~±4σ, stored as
    # a bf16 trace-time constant (mask precision is irrelevant).
    idx = np.arange(n)
    d = (idx[:, None] - idx[None, :]).astype(np.float64)
    g = np.exp(-(d ** 2) / (2.0 * sigma ** 2))
    g = np.where(np.abs(d) <= 4.0 * sigma, g, 0.0)
    g = g / g.sum(axis=1, keepdims=True)
    return jnp.asarray(g, dtype=jnp.bfloat16)


def _divisors(n):
    out = set()
    d = 1
    while d * d <= n:
        if n % d == 0:
            out.add(d)
            out.add(n // d)
        d += 1
    return out


def _pick_tiles(nc, hw, budget_bytes=12 * 1024 * 1024,
                target_block_bytes=2 * 1024 * 1024):
    """Pick (R, T) tiles for the flattened (N*C, H*W) image.

    R divides N*C and is a multiple of 8 (or equals N*C); T divides H*W and is
    a multiple of 128 (or equals H*W).  The footprint counts sublane padding,
    double-buffered in/out f32 blocks and the double-buffered bf16 alpha block,
    and stays under ~12 MiB (safe on v5e 16 MiB scoped default and v7x 64 MiB
    physical VMEM).  Prefers >=2 total grid steps so both v7x TCs get work.
    Returns (R, T, footprint_bytes)."""
    row_cands = sorted({d for d in _divisors(nc) if d % 8 == 0} | {nc})
    col_cands = sorted({d for d in _divisors(hw) if d % 128 == 0} | {hw})

    def pad8(r):
        return -(-r // 8) * 8

    def block_bytes(r, t):
        return pad8(r) * t * 4

    def footprint(r, t):
        # 2x in + 2x out (f32) + 2x alpha (bf16, sublane-padded 1 -> 8).
        return 4 * block_bytes(r, t) + 2 * 8 * t * 2

    best = None
    for r in row_cands:
        for t in col_cands:
            if footprint(r, t) > budget_bytes:
                continue
            bb = block_bytes(r, t)
            score = (min(bb, target_block_bytes), -bb)
            if best is None or score > best[0]:
                best = (score, r, t)
    if best is None:
        r, t = min(row_cands), min(col_cands)   # nothing fits; smallest legal
    else:
        _, r, t = best

    # v7x megacore: ensure >=2 grid steps when a legal split exists.
    if (nc // r) * (hw // t) < 2:
        smaller_t = [c for c in col_cands if c < t]
        smaller_r = [c for c in row_cands if c < r]
        if smaller_t:
            t = max(smaller_t)
        elif smaller_r:
            r = max(smaller_r)
    return r, t, footprint(r, t)


@partial(jax.jit,
         static_argnames=("probability", "min_area_ratio", "max_area_ratio",
                          "brightness_factor_range", "blur_radius"),
         donate_argnums=(0,))
def random_local_exposure(img, key, probability=0.5, min_area_ratio=0.5,
                          max_area_ratio=1.5, brightness_factor_range=(0.5, 2.0),
                          blur_radius=20.0):
    """img: (N, C, H, W) float32 in [0, 255]."""
    N, C, H, W = img.shape
    NC, HW = N * C, H * W
    k1, k2, k3, k4, k5 = jax.random.split(key, 5)

    # On-device equivalents of the module's random.* draws (no host syncs).
    apply = (jax.random.uniform(k1) < probability).astype(jnp.float32)
    area_ratio = jax.random.uniform(k2, minval=min_area_ratio,
                                    maxval=max_area_ratio)
    aw = jnp.floor(W * jnp.sqrt(area_ratio))          # int(W * ratio**0.5)
    ah = jnp.floor(H * jnp.sqrt(area_ratio))
    aw_half = jnp.floor_divide(aw, 2.0)
    ah_half = jnp.floor_divide(ah, 2.0)
    # random.randint(-aw//2, W + aw//2) (inclusive) ~ floor(uniform[lo, hi+1))
    cx = jnp.floor(jax.random.uniform(
        k3, minval=jnp.floor_divide(-aw, 2.0), maxval=W + aw_half + 1.0))
    cy = jnp.floor(jax.random.uniform(
        k4, minval=jnp.floor_divide(-ah, 2.0), maxval=H + ah_half + 1.0))
    brightness_factor = jax.random.uniform(
        k5, minval=brightness_factor_range[0],
        maxval=brightness_factor_range[1])

    # --- Pre-blurred, normalized mask ("alpha") outside the kernel.
    rx = jnp.maximum(aw_half, 1e-3)                   # ellipse semi-axes
    ry = jnp.maximum(ah_half, 1e-3)
    yy = jax.lax.broadcasted_iota(jnp.float32, (H, W), 0)
    xx = jax.lax.broadcasted_iota(jnp.float32, (H, W), 1)
    dist = ((xx - cx) / rx) ** 2 + ((yy - cy) / ry) ** 2
    ellipse = jnp.where(dist <= 1.0, 255.0, 0.0).astype(jnp.bfloat16)
    gh = _gauss_matrix(H, blur_radius)                # bf16, banded
    gw = _gauss_matrix(W, blur_radius)
    blurred = jnp.dot(
        jnp.dot(gh, ellipse, preferred_element_type=jnp.float32
                ).astype(jnp.bfloat16),
        gw.T, preferred_element_type=jnp.float32)     # separable Gaussian blur
    alpha = jnp.clip(blurred, 0.0, 255.0) * (1.0 / 255.0)
    # Fold the "apply with probability p" flag into alpha: alpha==0 -> identity.
    alpha = alpha * apply
    alpha_flat = alpha.reshape(1, HW).astype(jnp.bfloat16)   # bf16 halves read

    factor_arr = jnp.reshape(brightness_factor, (1,)).astype(jnp.float32)

    # --- Lane/sublane-dense streaming composite over the flattened image.
    img_flat = img.reshape(NC, HW)
    R, T, fp_bytes = _pick_tiles(NC, HW)
    grid = (HW // T, NC // R)   # tile axis outermost -> alpha DMA not re-issued

    # Footprint is normally <= 12 MiB (fits every generation's default scoped
    # VMEM); only raise the limit in the degenerate no-legal-split case.
    vmem_limit = None
    if fp_bytes > 12 * 1024 * 1024:
        vmem_limit = min(fp_bytes + (2 << 20), 64 << 20)

    out_flat = pl.pallas_call(
        _local_exposure_kernel,
        out_shape=jax.ShapeDtypeStruct((NC, HW), img.dtype),
        grid_spec=pltpu.PrefetchScalarGridSpec(
            num_scalar_prefetch=0,
            grid=grid,
            in_specs=[
                pl.BlockSpec(memory_space=pltpu.MemorySpace.SMEM),  # factor
                pl.BlockSpec((R, T), lambda t, r: (r, t)),          # img
                pl.BlockSpec((1, T), lambda t, r: (0, t)),          # alpha
            ],
            out_specs=pl.BlockSpec((R, T), lambda t, r: (r, t)),
        ),
        input_output_aliases={1: 0},   # write into img's own HBM buffer
        compiler_params=pltpu.CompilerParams(
            dimension_semantics=("parallel", "parallel"),
            vmem_limit_bytes=vmem_limit),
    )(factor_arr, img_flat, alpha_flat)

    return out_flat.reshape(N, C, H, W)


if __name__ == "__main__":
    key = jax.random.PRNGKey(0)
    k_img, k_aug = jax.random.split(key)
    # Small deterministic example: batch=2, RGB, 16x16, values in [0, 255].
    img = jax.random.uniform(k_img, (2, 3, 16, 16), dtype=jnp.float32,
                             minval=0.0, maxval=255.0)
    out = random_local_exposure(img, k_aug)
    jax.block_until_ready(out)
    assert out.shape == (2, 3, 16, 16) and out.dtype == jnp.float32
    assert bool(jnp.all(jnp.isfinite(out)))
    assert bool(jnp.all(out <= 255.0 + 1e-3)) and bool(jnp.all(out >= -1e-3))
    print("KERNEL_OK")
</pallas_src>

<mosaic_0001>
module attributes {stable_mosaic.version = 11 : i64} {
  func.func @_local_exposure_kernel(%arg0: i32, %arg1: i32, %arg2: memref<1xf32, #tpu.memory_space<smem>>, %arg3: memref<6x128xf32, #tpu.memory_space<vmem>>, %arg4: memref<1x128xbf16, #tpu.memory_space<vmem>>, %arg5: memref<6x128xf32, #tpu.memory_space<vmem>>) attributes {dimension_semantics = [#tpu.dimension_semantics<parallel>, #tpu.dimension_semantics<parallel>], iteration_bounds = array<i64: 2, 1>, scalar_prefetch = 0 : i64, scratch_operands = 0 : i64, tpu.core_type = #tpu.core_type<tc>, window_params = [{transform_indices = @transform_0, window_bounds = array<i64: 1>}, {transform_indices = @transform_1, window_bounds = array<i64: 6, 128>}, {transform_indices = @transform_2, window_bounds = array<i64: 1, 128>}, {transform_indices = @transform_3, window_bounds = array<i64: 6, 128>}]} {
    %c0 = arith.constant 0 : index
    %0 = memref.load %arg2[%c0] : memref<1xf32, #tpu.memory_space<smem>>
    %c0_0 = arith.constant 0 : index
    %c0_1 = arith.constant 0 : index
    %1 = vector.load %arg3[%c0_0, %c0_1] : memref<6x128xf32, #tpu.memory_space<vmem>>, vector<6x128xf32>
    %2 = vector.broadcast %0 : f32 to vector<6x128xf32>
    %3 = arith.mulf %1, %2 : vector<6x128xf32>
    %cst = arith.constant 2.550000e+02 : f32
    %4 = vector.broadcast %cst : f32 to vector<6x128xf32>
    %5 = arith.minimumf %3, %4 : vector<6x128xf32>
    %c0_2 = arith.constant 0 : index
    %c0_3 = arith.constant 0 : index
    %6 = vector.load %arg4[%c0_2, %c0_3] : memref<1x128xbf16, #tpu.memory_space<vmem>>, vector<1x128xbf16>
    %7 = arith.extf %6 : vector<1x128xbf16> to vector<1x128xf32>
    %8 = arith.subf %5, %1 : vector<6x128xf32>
    %9 = vector.broadcast %7 : vector<1x128xf32> to vector<6x128xf32>
    %10 = arith.mulf %8, %9 : vector<6x128xf32>
    %11 = arith.addf %1, %10 : vector<6x128xf32>
    %c0_4 = arith.constant 0 : index
    %c0_5 = arith.constant 0 : index
    %12 = vector.load %arg5[%c0_4, %c0_5] : memref<6x128xf32, #tpu.memory_space<vmem>>, vector<6x128xf32>
    tpu.vector_store %arg5[%c0_4, %c0_5], %11 {strides = array<i32>} : memref<6x128xf32, #tpu.memory_space<vmem>>, vector<6x128xf32>,
    return
  }
  func.func @transform_0(%arg0: i32, %arg1: i32) -> i32 {
    %c0_i32 = arith.constant 0 : i32
    %c0_i32_0 = arith.constant 0 : i32
    return %c0_i32 : i32
  }
  func.func @transform_1(%arg0: i32, %arg1: i32) -> (i32, i32) {
    %c0_i32 = arith.constant 0 : i32
    return %arg1, %arg0 : i32, i32
  }
  func.func @transform_2(%arg0: i32, %arg1: i32) -> (i32, i32) {
    %c0_i32 = arith.constant 0 : i32
    %c0_i32_0 = arith.constant 0 : i32
    return %c0_i32, %arg0 : i32, i32
  }
  func.func @transform_3(%arg0: i32, %arg1: i32) -> (i32, i32) {
    %c0_i32 = arith.constant 0 : i32
    return %arg1, %arg0 : i32, i32
  }
}

</mosaic_0001>

<llo_original>
// kernel: random_local_exposure.3
$region0: #{random_local_exposure.3}
  #allocation0 [shape = 'u32[]', space=smem, size = 0x4, offset = 0x4, fixed_abs, tag = 'smem constant byte address 0x4 - core index']
  #allocation1 [shape = 'u32[144,128]{1,0:T(1,128)}', space=vmem, size = 0x12000, scoped, tag = 'internal scratch']
  #allocation2 [shape = 'f32[1]{0:T(128)S(6)}', space=smem, size = 0x200, scoped, tag = 'scoped memory for random_local_exposure.3']
  %s0 = inlined_call_operand.<no memory space> [shape: f32[1], index: 0, kind: input, shape index: {}]
  %s1 = inlined_call_operand.vmem [shape: f32[6,256], index: 1, kind: input, shape index: {}, may-alias: {1,3}]
  %s2 = inlined_call_operand.vmem [shape: bf16[1,256], index: 2, kind: input, shape index: {}]
  %s3 = inlined_call_operand.vmem [shape: f32[6,256], index: 3, kind: output, shape index: {}, may-alias: {1,3}]
  %s4 = sld [smem:[#allocation0]]
  $region45: #{random_local_exposure.3} parent=0
    _
  %s6 = ssub.s32 1, %s4
  %s7 = scalar_select 0, %s6, %s4
  %8 = sst [smem:[#allocation2]] %s0
  loop: start=0, step=1, limit=4
  $region2: #{random_local_exposure.3} parent=0 // loop_pre_header
    _
  $region3: #{random_local_exposure.3} parent=0 // loop_header
    %s10 = sphi 0, %s14
    %p11 = scmp.ge.s32.totalorder %s10, 4
    %s17 = sphi 0, %s29
    %s18 = sphi 0, %s25
    %s19 = sphi 0, %s17
    %s20 = sphi 0, %s18
    %s21 = sphi 0, %s19
    %s22 = sphi 0, %s20
    %s30 = sphi 0, %s30
    %s32 = sphi 0, %s30
    %s33 = sphi 0, %s32
    %s47 = sphi 0, %s33
    %s55 = sphi 0, %s57
    %s58 = sphi 0, %s55
    %s59 = sphi 0, %s58
    %s75 = sphi 0, %s59
    %s81 = sphi 0, %s83
    %s84 = sphi 0, %s81
    %s85 = sphi 0, %s84
    %s101 = sphi 0, %s85
    %s109 = sphi 0, %s111
    %s112 = sphi 0, %s109
    %s113 = sphi 0, %s112
    %s129 = sphi 0, %s113
  $region4: #{random_local_exposure.3} parent=0 // loop_header_branch
    %13 = sbr.rel (%p11) target = $region8
  $region5: #{random_local_exposure.3} parent=0 // loop_body
    %s15 = ssub.s32 %s10, 1
    %s16 = ssub.s32 %s10, 2
    %s23 = sadd.s32 1, %s18
    %p24 = scmp.ge.s32.totalorder %s23, 1
    %s25 = scalar_select %p24, 0, %s23
    %s26 = sadd.s32 1, %s17
    %s27 = scalar_select %p24, %s26, %s17
    %p28 = scmp.ge.s32.totalorder %s27, 2
    %s29 = scalar_select %p28, 0, %s27
    %s31 = sadd.s32 %s30, 1
    %p34 = scmp.eq.s32.totalorder %s10, 1
    %p35 = scmp.ne.s32.totalorder %s30, %s32
    %p36 = scmp.eq.s32.totalorder %s10, 0
    %p37 = por %p35, %p36
    %p38 = scmp.ne.s32.totalorder %s30, %s32
    %p39 = scmp.eq.s32.totalorder %s15, 1
    %p40 = por %p38, %p39
    %p41 = scmp.ne.s32.totalorder %s32, %s33
    %p42 = scmp.eq.s32.totalorder %s15, 0
    %p43 = por %p41, %p42
    %p44 = scmp.ne.s32.totalorder %s32, %s33
    %p45 = scmp.eq.s32.totalorder %s16, 1
    %p46 = por %p44, %p45
    %p48 = scmp.ne.s32.totalorder %s33, %s47
    %p49 = scmp.eq.s32.totalorder %s16, 0
    %p50 = por %p48, %p49
    %s51 = ssub.s32 %s18, %s25
    %s52 = ssub.s32 %s17, %s29
    %s53 = sor.u32 %s51, %s52
    %p54 = scmp.eq.s32.totalorder %s53, 0
    %s56 = sadd.s32 %s55, 1
    %s57 = scalar_select %p54, %s55, %s56
    %p60 = pneg %p54
    %p61 = scmp.eq.s32.totalorder %s10, 1
    %p62 = por %p60, %p61
    %p63 = scmp.ne.s32.totalorder %s55, %s58
    %p64 = scmp.eq.s32.totalorder %s10, 0
    %p65 = por %p63, %p64
    %p66 = scmp.ne.s32.totalorder %s55, %s58
    %p67 = scmp.eq.s32.totalorder %s15, 1
    %p68 = por %p66, %p67
    %p69 = scmp.ne.s32.totalorder %s58, %s59
    %p70 = scmp.eq.s32.totalorder %s15, 0
    %p71 = por %p69, %p70
    %p72 = scmp.ne.s32.totalorder %s58, %s59
    %p73 = scmp.eq.s32.totalorder %s16, 1
    %p74 = por %p72, %p73
    %p76 = scmp.ne.s32.totalorder %s59, %s75
    %p77 = scmp.eq.s32.totalorder %s16, 0
    %p78 = por %p76, %p77
    %s79 = ssub.s32 %s17, %s29
    %p80 = scmp.eq.s32.totalorder %s79, 0
    %s82 = sadd.s32 %s81, 1
    %s83 = scalar_select %p80, %s81, %s82
    %p86 = pneg %p80
    %p87 = scmp.eq.s32.totalorder %s10, 1
    %p88 = por %p86, %p87
    %p89 = scmp.ne.s32.totalorder %s81, %s84
    %p90 = scmp.eq.s32.totalorder %s10, 0
    %p91 = por %p89, %p90
    %p92 = scmp.ne.s32.totalorder %s81, %s84
    %p93 = scmp.eq.s32.totalorder %s15, 1
    %p94 = por %p92, %p93
    %p95 = scmp.ne.s32.totalorder %s84, %s85
    %p96 = scmp.eq.s32.totalorder %s15, 0
    %p97 = por %p95, %p96
    %p98 = scmp.ne.s32.totalorder %s84, %s85
    %p99 = scmp.eq.s32.totalorder %s16, 1
    %p100 = por %p98, %p99
    %p102 = scmp.ne.s32.totalorder %s85, %s101
    %p103 = scmp.eq.s32.totalorder %s16, 0
    %p104 = por %p102, %p103
    %s105 = ssub.s32 %s18, %s25
    %s106 = ssub.s32 %s17, %s29
    %s107 = sor.u32 %s105, %s106
    %p108 = scmp.eq.s32.totalorder %s107, 0
    %s110 = sadd.s32 %s109, 1
    %s111 = scalar_select %p108, %s109, %s110
    %p114 = pneg %p108
    %p115 = scmp.eq.s32.totalorder %s10, 1
    %p116 = por %p114, %p115
    %p117 = scmp.ne.s32.totalorder %s109, %s112
    %p118 = scmp.eq.s32.totalorder %s10, 0
    %p119 = por %p117, %p118
    %p120 = scmp.ne.s32.totalorder %s109, %s112
    %p121 = scmp.eq.s32.totalorder %s15, 1
    %p122 = por %p120, %p121
    %p123 = scmp.ne.s32.totalorder %s112, %s113
    %p124 = scmp.eq.s32.totalorder %s15, 0
    %p125 = por %p123, %p124
    %p126 = scmp.ne.s32.totalorder %s112, %s113
    %p127 = scmp.eq.s32.totalorder %s16, 1
    %p128 = por %p126, %p127
    %p130 = scmp.ne.s32.totalorder %s113, %s129
    %p131 = scmp.eq.s32.totalorder %s16, 0
    %p132 = por %p130, %p131
    %p133 = scmp.le.s32.totalorder 1, %s10
    %p134 = scmp.lt.s32.totalorder %s10, 3
    %p135 = pnand %p133, %p134
    %p136 = pneg %p135
    // Predicated region
    $region9: #{random_local_exposure.3} parent=5 // pred_check
      _
    $region10: #{random_local_exposure.3} parent=5 // pred_check_branch
      %138 = sbr.rel (%p135) target = $region12
    $region11: #{random_local_exposure.3} parent=5 // pred_region
      %s139 = ssub.s32 %s10, 1
      // Predicated region
      $region13: #{random_local_exposure.3} parent=11 // pred_check
        %p140 = pneg %p43
      $region14: #{random_local_exposure.3} parent=11 // pred_check_branch
        %142 = sbr.rel (%p140) target = $region16
      $region15: #{random_local_exposure.3} parent=11 // pred_region
        _
      $region16: #{random_local_exposure.3} parent=11 // pred_fallthru
        _
    $region12: #{random_local_exposure.3} parent=5 // pred_fallthru
      _
    %p143 = scmp.lt.s32.totalorder %s10, 2
    // Predicated region
    $region17: #{random_local_exposure.3} parent=5 // pred_check
      %p144 = pneg %p143
    $region18: #{random_local_exposure.3} parent=5 // pred_check_branch
      %146 = sbr.rel (%p144) target = $region20
    $region19: #{random_local_exposure.3} parent=5 // pred_region
      // Predicated region
      $region21: #{random_local_exposure.3} parent=19 // pred_check
        %p147 = pneg %p65
      $region22: #{random_local_exposure.3} parent=19 // pred_check_branch
        %149 = sbr.rel (%p147) target = $region24
      $region23: #{random_local_exposure.3} parent=19 // pred_region
        %p150 = scmp.lt.s32.totalorder %s18, 0
        %s151 = scalar_select %p150, %s18, 0
        %p152 = scmp.lt.s32.totalorder %s17, 1
        %s153 = scalar_select %p152, %s17, 1
        %s154 = smul.addr %s151, 2
        %s155 = sadd.s32 %s153, %s154
        %s156 = smul.addr %s155, 8
        %s157 = scalar_lea.vmem %s1, %s156
      $region24: #{random_local_exposure.3} parent=19 // pred_fallthru
        _
      // Predicated region
      $region25: #{random_local_exposure.3} parent=19 // pred_check
        %p158 = pneg %p91
      $region26: #{random_local_exposure.3} parent=19 // pred_check_branch
        %160 = sbr.rel (%p158) target = $region28
      $region27: #{random_local_exposure.3} parent=19 // pred_region
        %p161 = scmp.lt.s32.totalorder %s17, 1
        %s162 = scalar_select %p161, %s17, 1
        %s163 = scalar_lea.vmem %s2, %s162
      $region28: #{random_local_exposure.3} parent=19 // pred_fallthru
        _
    $region20: #{random_local_exposure.3} parent=5 // pred_fallthru
      _
    %p164 = scmp.le.s32.totalorder 1, %s10
    %p165 = scmp.lt.s32.totalorder %s10, 3
    %p166 = pnand %p164, %p165
    %p167 = pneg %p166
    // Predicated region
    $region29: #{random_local_exposure.3} parent=5 // pred_check
      _
    $region30: #{random_local_exposure.3} parent=5 // pred_check_branch
      %169 = sbr.rel (%p166) target = $region32
    $region31: #{random_local_exposure.3} parent=5 // pred_region
      %s170 = ssub.s32 %s10, 1
      %p171 = pneg %p43
      %p172 = pneg %p40
      %p173 = scmp.lt.s32.totalorder %s20, 0
      %s174 = scalar_select %p173, %s20, 0
      %p175 = scmp.lt.s32.totalorder %s19, 1
      %s176 = scalar_select %p175, %s19, 1
      %s177 = smul.addr %s174, 2
      %s178 = sadd.s32 %s176, %s177
      %s179 = smul.addr %s178, 8
      %s180 = scalar_lea.vmem %s1, %s179
      %p181 = pneg %p71
      %p182 = pneg %p68
      %p183 = scmp.lt.s32.totalorder %s19, 1
      %s184 = scalar_select %p183, %s19, 1
      %s185 = scalar_lea.vmem %s2, %s184
      %p186 = pneg %p97
      %p187 = pneg %p94
      %p188 = pneg %p125
      %p189 = pneg %p122
      %p190 = scmp.lt.s32.totalorder %s20, 0
      %s191 = scalar_select %p190, %s20, 0
      %p192 = scmp.lt.s32.totalorder %s19, 1
      %s193 = scalar_select %p192, %s19, 1
      %s194 = smul.addr %s191, 2
      %s195 = sadd.s32 %s193, %s194
      %s196 = smul.addr %s195, 8
      %s197 = scalar_lea.vmem %s3, %s196
      %p198 = scmp.lt.s32.totalorder %s20, 0
      %s199 = scalar_select %p198, %s20, 0
      %p200 = scmp.lt.s32.totalorder %s19, 1
      %s201 = scalar_select %p200, %s19, 1
      %s202 = smul.addr %s199, 2
      %s203 = sadd.s32 %s201, %s202
      %s204 = smul.addr %s203, 8
      %s205 = scalar_lea.vmem %s1, %s204
      %p206 = scmp.lt.s32.totalorder %s19, 1
      %s207 = scalar_select %p206, %s19, 1
      %s208 = scalar_lea.vmem %s2, %s207
      %p209 = scmp.lt.s32.totalorder %s20, 0
      %s210 = scalar_select %p209, %s20, 0
      %p211 = scmp.lt.s32.totalorder %s19, 1
      %s212 = scalar_select %p211, %s19, 1
      %s213 = smul.addr %s210, 2
      %s214 = sadd.s32 %s212, %s213
      %s215 = smul.addr %s214, 8
      %s216 = scalar_lea.vmem %s3, %s215
      %s217 = sld [smem:[#allocation2]]
      %v218 = vld [vmem:[%s205] sm:$0x3f]
      %v219 = vstv %s217
      %v220 = vmul.f32 %v218, %v219
      %v221 = vmin.f32 %v220, 255.0
      %v222 = vld [vmem:[%s208] sm:$0x1]
      %v223 = vunpack.c.l.bf16 %v222
      %v224 = vsub.f32 %v221, %v218
      %v225 = vlaneseq
      %v226 = vshrl.u32 %v225, 7
      %v227 = vsub.s32 0, %v226
      %v228 = vrot.slane %v223, %v227
      %v229 = vmul.f32 %v224, %v228
      %v230 = vadd.f32 %v218, %v229
      %231 = vst [vmem:[%s216] sm:$0x3f] %v230
      %p232 = scmp.lt.s32.totalorder %s20, 0
      %s233 = scalar_select %p232, %s20, 0
      %p234 = scmp.lt.s32.totalorder %s19, 1
      %s235 = scalar_select %p234, %s19, 1
      %s236 = smul.addr %s233, 2
      %s237 = sadd.s32 %s235, %s236
      %s238 = smul.addr %s237, 8
      %s239 = scalar_lea.vmem %s3, %s238
      // Predicated region
      $region33: #{random_local_exposure.3} parent=31 // pred_check
        %p240 = pneg %p122
      $region34: #{random_local_exposure.3} parent=31 // pred_check_branch
        %242 = sbr.rel (%p240) target = $region36
      $region35: #{random_local_exposure.3} parent=31 // pred_region
        _
      $region36: #{random_local_exposure.3} parent=31 // pred_fallthru
        _
    $region32: #{random_local_exposure.3} parent=5 // pred_fallthru
      _
    %p243 = scmp.le.s32.totalorder 2, %s10
    // Predicated region
    $region37: #{random_local_exposure.3} parent=5 // pred_check
      %p244 = pneg %p243
    $region38: #{random_local_exposure.3} parent=5 // pred_check_branch
      %246 = sbr.rel (%p244) target = $region40
    $region39: #{random_local_exposure.3} parent=5 // pred_region
      %s247 = ssub.s32 %s10, 2
      // Predicated region
      $region41: #{random_local_exposure.3} parent=39 // pred_check
        %p248 = pneg %p128
      $region42: #{random_local_exposure.3} parent=39 // pred_check_branch
        %250 = sbr.rel (%p248) target = $region44
      $region43: #{random_local_exposure.3} parent=39 // pred_region
        %p251 = scmp.lt.s32.totalorder %s22, 0
        %s252 = scalar_select %p251, %s22, 0
        %p253 = scmp.lt.s32.totalorder %s21, 1
        %s254 = scalar_select %p253, %s21, 1
        %s255 = smul.addr %s252, 2
        %s256 = sadd.s32 %s254, %s255
        %s257 = smul.addr %s256, 8
        %s258 = scalar_lea.vmem %s3, %s257
      $region44: #{random_local_exposure.3} parent=39 // pred_fallthru
        _
    $region40: #{random_local_exposure.3} parent=5 // pred_fallthru
      _
  $region6: #{random_local_exposure.3} parent=0 // loop_footer
    %s14 = sadd.s32 1, %s10
  $region7: #{random_local_exposure.3} parent=0 // loop_footer_branch
    %9 = sbr.rel target = $region3
  $region8: #{random_local_exposure.3} parent=0 // loop_exit
    _

</llo_original>
